<compile_context>
chip_gen: v6e
topology: v6e:2x2x1
jax: 0.10.0
libtpu: 0.0.40
codegen_flags: <defaults>
</compile_context>

<pallas_src>
import functools

import jax
import jax.numpy as jnp
from jax.experimental import pallas as pl
from jax.experimental.pallas import tpu as pltpu

EPS = 1e-12


def _round_up(x, m):
    return (x + m - 1) // m * m


def _criterion_kernel(num_classes, eos_coef,
                      nbox_ref,                               # SMEM (1,) int32
                      logits_ref, tcls_ref, tlen_ref,         # VMEM
                      sbox_ref, tbox_ref,                     # VMEM (8, N_pad)
                      out_ref):                               # SMEM (4,) f32
    B, Q, C1 = logits_ref.shape
    n_pad = sbox_ref.shape[1]

    logits = logits_ref[...]          # (B, Q, C1) f32, unpadded
    tcls = tcls_ref[...]              # (B, Q) int32 target class per query

    # ---------------- loss_labels: weighted cross-entropy -------------------
    no_obj = logits[..., num_classes]                         # (B, Q) static slice
    fg_max = jnp.max(logits[..., :num_classes], axis=-1)      # (B, Q)
    m = jnp.maximum(fg_max, no_obj)                           # overall max, reused
    lse = jnp.log(jnp.sum(jnp.exp(logits - m[..., None]), axis=-1)) + m
    cls_iota = jax.lax.broadcasted_iota(jnp.int32, (1, 1, C1), 2)
    tgt_logit = jnp.sum(
        jnp.where(cls_iota == tcls[..., None], logits, 0.0), axis=-1)
    tgt_w = jnp.where(tcls == num_classes, eos_coef, 1.0)     # empty_weight[y]
    loss_ce = jnp.sum(tgt_w * (lse - tgt_logit)) / jnp.sum(tgt_w)

    # ---------------- loss_cardinality ---------------------------------------
    # argmax != no-object class  <=>  max foreground logit >= no-object logit
    is_obj = jnp.where(fg_max >= no_obj, 1.0, 0.0)            # (B, Q)
    card_pred = jnp.sum(is_obj, axis=1, keepdims=True)        # (B, 1)
    card_err = jnp.sum(jnp.abs(card_pred - tlen_ref[...])) / B

    # ---------------- loss_boxes: L1 + GIoU ----------------------------------
    n_total = nbox_ref[0]
    num_boxes = jnp.maximum(n_total.astype(jnp.float32), 1.0)
    lane = jax.lax.broadcasted_iota(jnp.int32, (1, n_pad), 1)
    bvalid = lane < n_total                                   # (1, N_pad)

    sb = sbox_ref[...]                 # rows 0..3 = src cx,cy,w,h ; rows 4..7 = 0
    tb = tbox_ref[...]                 # rows 0..3 = tgt cx,cy,w,h ; rows 4..7 = 0
    # padding rows are zero in both slabs, so they contribute 0 to the L1 sum
    loss_bbox = jnp.sum(jnp.where(bvalid, jnp.abs(sb - tb), 0.0)) / num_boxes

    scx, scy, sw, sh = sb[0:1], sb[1:2], sb[2:3], sb[3:4]
    tcx, tcy, tw, th = tb[0:1], tb[1:2], tb[2:3], tb[3:4]
    sx1, sy1 = scx - 0.5 * sw, scy - 0.5 * sh
    sx2, sy2 = scx + 0.5 * sw, scy + 0.5 * sh
    tx1, ty1 = tcx - 0.5 * tw, tcy - 0.5 * th
    tx2, ty2 = tcx + 0.5 * tw, tcy + 0.5 * th
    area_s = (sx2 - sx1) * (sy2 - sy1)
    area_t = (tx2 - tx1) * (ty2 - ty1)
    iw = jnp.maximum(jnp.minimum(sx2, tx2) - jnp.maximum(sx1, tx1), 0.0)
    ih = jnp.maximum(jnp.minimum(sy2, ty2) - jnp.maximum(sy1, ty1), 0.0)
    inter = iw * ih
    union = area_s + area_t - inter
    iou = inter / jnp.maximum(union, EPS)
    cw = jnp.maximum(jnp.maximum(sx2, tx2) - jnp.minimum(sx1, tx1), 0.0)
    ch = jnp.maximum(jnp.maximum(sy2, ty2) - jnp.minimum(sy1, ty1), 0.0)
    c_area = cw * ch
    giou = iou - (c_area - union) / jnp.maximum(c_area, EPS)
    loss_giou = jnp.sum(jnp.where(bvalid, 1.0 - giou, 0.0)) / num_boxes

    out_ref[0] = loss_ce
    out_ref[1] = card_err
    out_ref[2] = loss_bbox
    out_ref[3] = loss_giou


def _run_criterion_kernel(nbox, logits, tcls, tlen, sbox, tbox,
                          num_classes, eos_coef):
    B, Q, C1 = logits.shape
    n_pad = sbox.shape[1]

    # vmem budget computed from the real block sizes (with generous headroom),
    # clamped so the same kernel stays within v7x's smaller VMEM.
    logits_bytes = B * Q * C1 * 4
    boxes_bytes = 2 * 8 * n_pad * 4
    misc_bytes = 8 * B * Q * 4 + 64 * 1024
    vmem_needed = 10 * logits_bytes + 4 * boxes_bytes + misc_bytes
    vmem_limit = int(min(max(2 * vmem_needed, 8 << 20), 32 << 20))

    kernel = functools.partial(_criterion_kernel, num_classes, eos_coef)
    return pl.pallas_call(
        kernel,
        out_shape=jax.ShapeDtypeStruct((4,), jnp.float32),
        in_specs=[
            pl.BlockSpec(memory_space=pltpu.MemorySpace.SMEM),   # nbox (1,)
            pl.BlockSpec(memory_space=pltpu.MemorySpace.VMEM),   # logits (B,Q,C1)
            pl.BlockSpec(memory_space=pltpu.MemorySpace.VMEM),   # tcls (B,Q)
            pl.BlockSpec(memory_space=pltpu.MemorySpace.VMEM),   # tlen (B,1)
            pl.BlockSpec(memory_space=pltpu.MemorySpace.VMEM),   # sbox (8,N_pad)
            pl.BlockSpec(memory_space=pltpu.MemorySpace.VMEM),   # tbox (8,N_pad)
        ],
        out_specs=pl.BlockSpec(memory_space=pltpu.MemorySpace.SMEM),
        compiler_params=pltpu.CompilerParams(vmem_limit_bytes=vmem_limit),
    )(nbox, logits, tcls, tlen, sbox, tbox)


def set_criterion_forward(outputs, targets, num_classes, eos_coef):
    """JAX/Pallas equivalent of SetCriterion.forward for losses
    ['labels', 'cardinality', 'boxes'] on the main (non-aux) outputs."""
    pred_logits = outputs["pred_logits"].astype(jnp.float32)   # [B, Q, C+1]
    pred_boxes = outputs["pred_boxes"].astype(jnp.float32)     # [B, Q, 4]
    B, Q, C1 = pred_logits.shape

    # TODO(synk): Hungarian matcher is an injected module; identity matching
    #             (target j -> prediction j) is used instead.
    sizes = [int(t["labels"].shape[0]) for t in targets]
    n_total = sum(sizes)

    # target class per query: matched queries get their label, rest no-object
    rows = []
    for b, t in enumerate(targets):
        n_b = sizes[b]
        pad = jnp.full((Q - n_b,), num_classes, jnp.int32)
        if n_b > 0:
            rows.append(jnp.concatenate([t["labels"].astype(jnp.int32), pad]))
        else:
            rows.append(pad)
    target_classes = jnp.stack(rows, axis=0)                   # (B, Q) int32

    # matched boxes, repacked as two sublane-aligned lane-dense (8, N_pad) slabs
    n_pad = max(128, _round_up(max(n_total, 1), 128))
    sbox = jnp.zeros((8, n_pad), jnp.float32)
    tbox = jnp.zeros((8, n_pad), jnp.float32)
    if n_total > 0:
        src_boxes = jnp.concatenate(
            [pred_boxes[b, :sizes[b]] for b in range(B)], axis=0)          # [N,4]
        tgt_boxes = jnp.concatenate(
            [targets[b]["boxes"].astype(jnp.float32)[:sizes[b]]
             for b in range(B)], axis=0)                                   # [N,4]
        sbox = sbox.at[0:4, :n_total].set(src_boxes.T)
        tbox = tbox.at[0:4, :n_total].set(tgt_boxes.T)

    tlen = jnp.array(sizes, jnp.float32).reshape(B, 1)
    nbox = jnp.array([n_total], jnp.int32)

    out = _run_criterion_kernel(nbox, pred_logits, target_classes, tlen,
                                sbox, tbox, num_classes, eos_coef)

    return {
        "loss_ce": out[0],
        "cardinality_error": out[1],
        "loss_bbox": out[2],
        "loss_giou": out[3],
    }


if __name__ == "__main__":
    key = jax.random.PRNGKey(0)
    B, Q, num_classes = 2, 16, 4          # C+1 = 5 classes including no-object
    eos_coef = 0.1

    k1, k2, k3, _ = jax.random.split(key, 4)
    pred_logits = jax.random.normal(k1, (B, Q, num_classes + 1), jnp.float32)
    pred_boxes = jax.nn.sigmoid(jax.random.normal(k2, (B, Q, 4), jnp.float32))

    # targets: batch 0 has 3 objects, batch 1 has 2 objects
    n_per_batch = [3, 2]
    targets = []
    tk = k3
    for b, n in enumerate(n_per_batch):
        tk, ka, kb = jax.random.split(tk, 3)
        labels = jax.random.randint(ka, (n,), 0, num_classes, jnp.int32)
        cxcy = 0.2 + 0.6 * jax.random.uniform(kb, (n, 2), jnp.float32)
        wh = 0.1 + 0.2 * jax.random.uniform(jax.random.fold_in(kb, 1), (n, 2),
                                            jnp.float32)
        boxes = jnp.concatenate([cxcy, wh], axis=1)
        targets.append({"labels": labels, "boxes": boxes})

    outputs = {"pred_logits": pred_logits, "pred_boxes": pred_boxes}
    losses = set_criterion_forward(outputs, targets, num_classes, eos_coef)
    losses = jax.tree_util.tree_map(jax.block_until_ready, losses)
    print("KERNEL_OK")
</pallas_src>

<mosaic_0001>
module attributes {stable_mosaic.version = 11 : i64} {
  func.func @_criterion_kernel(%arg0: memref<1xi32, #tpu.memory_space<smem>>, %arg1: memref<2x16x5xf32, #tpu.memory_space<vmem>>, %arg2: memref<2x16xi32, #tpu.memory_space<vmem>>, %arg3: memref<2x1xf32, #tpu.memory_space<vmem>>, %arg4: memref<8x128xf32, #tpu.memory_space<vmem>>, %arg5: memref<8x128xf32, #tpu.memory_space<vmem>>, %arg6: memref<4xf32, #tpu.memory_space<smem>>) attributes {dimension_semantics = [], scalar_prefetch = 0 : i64, scratch_operands = 0 : i64, tpu.core_type = #tpu.core_type<tc>} {
    %c0 = arith.constant 0 : index
    %c0_0 = arith.constant 0 : index
    %c0_1 = arith.constant 0 : index
    %0 = vector.load %arg1[%c0, %c0_0, %c0_1] : memref<2x16x5xf32, #tpu.memory_space<vmem>>, vector<2x16x5xf32>
    %c0_2 = arith.constant 0 : index
    %c0_3 = arith.constant 0 : index
    %1 = vector.load %arg2[%c0_2, %c0_3] : memref<2x16xi32, #tpu.memory_space<vmem>>, vector<2x16xi32>
    %2 = vector.extract_strided_slice %0 {offsets = [0, 0, 4], sizes = [2, 16, 1], strides = [1, 1, 1]} : vector<2x16x5xf32> to vector<2x16x1xf32>
    %3 = vector.shape_cast %2 : vector<2x16x1xf32> to vector<2x16xf32>
    %4 = vector.extract_strided_slice %0 {offsets = [0, 0, 0], sizes = [2, 16, 4], strides = [1, 1, 1]} : vector<2x16x5xf32> to vector<2x16x4xf32>
    %cst = arith.constant dense<0xFF800000> : vector<2x16xf32>
    %5 = vector.multi_reduction <maximumf>, %4, %cst [2] : vector<2x16x4xf32> to vector<2x16xf32>
    %6 = arith.maximumf %5, %3 : vector<2x16xf32>
    %7 = vector.shape_cast %6 : vector<2x16xf32> to vector<2x16x1xf32>
    %8 = vector.broadcast %7 : vector<2x16x1xf32> to vector<2x16x5xf32>
    %9 = arith.subf %0, %8 : vector<2x16x5xf32>
    %10 = math.exp %9 : vector<2x16x5xf32>
    %cst_4 = arith.constant dense<0.000000e+00> : vector<2x16xf32>
    %11 = vector.multi_reduction <add>, %10, %cst_4 [2] : vector<2x16x5xf32> to vector<2x16xf32>
    %12 = math.log %11 : vector<2x16xf32>
    %13 = arith.addf %12, %6 : vector<2x16xf32>
    %14 = tpu.iota {dimensions = array<i32: 2>} : vector<1x1x5xi32>
    %15 = vector.shape_cast %1 : vector<2x16xi32> to vector<2x16x1xi32>
    %16 = vector.broadcast %14 : vector<1x1x5xi32> to vector<2x16x5xi32>
    %17 = vector.broadcast %15 : vector<2x16x1xi32> to vector<2x16x5xi32>
    %18 = arith.cmpi eq, %16, %17 : vector<2x16x5xi32>
    %cst_5 = arith.constant 0.000000e+00 : f32
    %19 = vector.broadcast %cst_5 : f32 to vector<2x16x5xf32>
    %20 = arith.select %18, %0, %19 : vector<2x16x5xi1>, vector<2x16x5xf32>
    %cst_6 = arith.constant dense<0.000000e+00> : vector<2x16xf32>
    %21 = vector.multi_reduction <add>, %20, %cst_6 [2] : vector<2x16x5xf32> to vector<2x16xf32>
    %c4_i32 = arith.constant 4 : i32
    %22 = vector.broadcast %c4_i32 : i32 to vector<2x16xi32>
    %23 = arith.cmpi eq, %1, %22 : vector<2x16xi32>
    %cst_7 = arith.constant 1.000000e-01 : f32
    %cst_8 = arith.constant 1.000000e+00 : f32
    %24 = vector.broadcast %cst_7 : f32 to vector<2x16xf32>
    %25 = vector.broadcast %cst_8 : f32 to vector<2x16xf32>
    %26 = arith.select %23, %24, %25 : vector<2x16xi1>, vector<2x16xf32>
    %27 = arith.subf %13, %21 : vector<2x16xf32>
    %28 = arith.mulf %26, %27 : vector<2x16xf32>
    %29 = vector.shape_cast %28 : vector<2x16xf32> to vector<1x2x16xf32>
    %cst_9 = arith.constant dense<0.000000e+00> : vector<1xf32>
    %30 = vector.multi_reduction <add>, %29, %cst_9 [1, 2] : vector<1x2x16xf32> to vector<1xf32>
    %31 = vector.shape_cast %30 : vector<1xf32> to vector<1x1x1xf32>
    %32 = vector.extract %31[0, 0, 0] : f32 from vector<1x1x1xf32>
    %33 = vector.shape_cast %26 : vector<2x16xf32> to vector<1x2x16xf32>
    %cst_10 = arith.constant dense<0.000000e+00> : vector<1xf32>
    %34 = vector.multi_reduction <add>, %33, %cst_10 [1, 2] : vector<1x2x16xf32> to vector<1xf32>
    %35 = vector.shape_cast %34 : vector<1xf32> to vector<1x1x1xf32>
    %36 = vector.extract %35[0, 0, 0] : f32 from vector<1x1x1xf32>
    %37 = arith.divf %32, %36 : f32
    %38 = arith.cmpf oge, %5, %3 : vector<2x16xf32>
    %cst_11 = arith.constant 1.000000e+00 : f32
    %cst_12 = arith.constant 0.000000e+00 : f32
    %39 = vector.broadcast %cst_11 : f32 to vector<2x16xf32>
    %40 = vector.broadcast %cst_12 : f32 to vector<2x16xf32>
    %41 = arith.select %38, %39, %40 : vector<2x16xi1>, vector<2x16xf32>
    %cst_13 = arith.constant dense<0.000000e+00> : vector<2xf32>
    %42 = vector.multi_reduction <add>, %41, %cst_13 [1] : vector<2x16xf32> to vector<2xf32>
    %43 = vector.shape_cast %42 : vector<2xf32> to vector<2x1xf32>
    %c0_14 = arith.constant 0 : index
    %c0_15 = arith.constant 0 : index
    %44 = vector.load %arg3[%c0_14, %c0_15] : memref<2x1xf32, #tpu.memory_space<vmem>>, vector<2x1xf32>
    %45 = arith.subf %43, %44 : vector<2x1xf32>
    %46 = math.absf %45 : vector<2x1xf32>
    %47 = vector.shape_cast %46 : vector<2x1xf32> to vector<1x2x1xf32>
    %cst_16 = arith.constant dense<0.000000e+00> : vector<1xf32>
    %48 = vector.multi_reduction <add>, %47, %cst_16 [1, 2] : vector<1x2x1xf32> to vector<1xf32>
    %49 = vector.shape_cast %48 : vector<1xf32> to vector<1x1x1xf32>
    %50 = vector.extract %49[0, 0, 0] : f32 from vector<1x1x1xf32>
    %cst_17 = arith.constant 2.000000e+00 : f32
    %51 = arith.divf %50, %cst_17 : f32
    %c0_18 = arith.constant 0 : index
    %52 = memref.load %arg0[%c0_18] : memref<1xi32, #tpu.memory_space<smem>>
    %53 = arith.sitofp %52 : i32 to f32
    %cst_19 = arith.constant 1.000000e+00 : f32
    %54 = arith.maximumf %53, %cst_19 : f32
    %55 = tpu.iota {dimensions = array<i32: 1>} : vector<1x128xi32>
    %56 = vector.broadcast %52 : i32 to vector<1x128xi32>
    %57 = arith.cmpi slt, %55, %56 : vector<1x128xi32>
    %c0_20 = arith.constant 0 : index
    %c0_21 = arith.constant 0 : index
    %58 = vector.load %arg4[%c0_20, %c0_21] : memref<8x128xf32, #tpu.memory_space<vmem>>, vector<8x128xf32>
    %c0_22 = arith.constant 0 : index
    %c0_23 = arith.constant 0 : index
    %59 = vector.load %arg5[%c0_22, %c0_23] : memref<8x128xf32, #tpu.memory_space<vmem>>, vector<8x128xf32>
    %60 = arith.subf %58, %59 : vector<8x128xf32>
    %61 = math.absf %60 : vector<8x128xf32>
    %cst_24 = arith.constant 0.000000e+00 : f32
    %62 = vector.shape_cast %57 : vector<1x128xi1> to vector<1x128xi1>
    %63 = vector.broadcast %62 : vector<1x128xi1> to vector<8x128xi1>
    %64 = vector.broadcast %cst_24 : f32 to vector<8x128xf32>
    %65 = arith.select %63, %61, %64 : vector<8x128xi1>, vector<8x128xf32>
    %66 = vector.shape_cast %65 : vector<8x128xf32> to vector<1x8x128xf32>
    %cst_25 = arith.constant dense<0.000000e+00> : vector<1xf32>
    %67 = vector.multi_reduction <add>, %66, %cst_25 [1, 2] : vector<1x8x128xf32> to vector<1xf32>
    %68 = vector.shape_cast %67 : vector<1xf32> to vector<1x1x1xf32>
    %69 = vector.extract %68[0, 0, 0] : f32 from vector<1x1x1xf32>
    %70 = arith.divf %69, %54 : f32
    %71 = vector.extract_strided_slice %58 {offsets = [0, 0], sizes = [1, 128], strides = [1, 1]} : vector<8x128xf32> to vector<1x128xf32>
    %72 = vector.extract_strided_slice %58 {offsets = [1, 0], sizes = [1, 128], strides = [1, 1]} : vector<8x128xf32> to vector<1x128xf32>
    %73 = vector.extract_strided_slice %58 {offsets = [2, 0], sizes = [1, 128], strides = [1, 1]} : vector<8x128xf32> to vector<1x128xf32>
    %74 = vector.extract_strided_slice %58 {offsets = [3, 0], sizes = [1, 128], strides = [1, 1]} : vector<8x128xf32> to vector<1x128xf32>
    %75 = vector.extract_strided_slice %59 {offsets = [0, 0], sizes = [1, 128], strides = [1, 1]} : vector<8x128xf32> to vector<1x128xf32>
    %76 = vector.extract_strided_slice %59 {offsets = [1, 0], sizes = [1, 128], strides = [1, 1]} : vector<8x128xf32> to vector<1x128xf32>
    %77 = vector.extract_strided_slice %59 {offsets = [2, 0], sizes = [1, 128], strides = [1, 1]} : vector<8x128xf32> to vector<1x128xf32>
    %78 = vector.extract_strided_slice %59 {offsets = [3, 0], sizes = [1, 128], strides = [1, 1]} : vector<8x128xf32> to vector<1x128xf32>
    %cst_26 = arith.constant 5.000000e-01 : f32
    %79 = vector.broadcast %cst_26 : f32 to vector<1x128xf32>
    %80 = arith.mulf %79, %73 : vector<1x128xf32>
    %81 = arith.subf %71, %80 : vector<1x128xf32>
    %cst_27 = arith.constant 5.000000e-01 : f32
    %82 = vector.broadcast %cst_27 : f32 to vector<1x128xf32>
    %83 = arith.mulf %82, %74 : vector<1x128xf32>
    %84 = arith.subf %72, %83 : vector<1x128xf32>
    %cst_28 = arith.constant 5.000000e-01 : f32
    %85 = vector.broadcast %cst_28 : f32 to vector<1x128xf32>
    %86 = arith.mulf %85, %73 : vector<1x128xf32>
    %87 = arith.addf %71, %86 : vector<1x128xf32>
    %cst_29 = arith.constant 5.000000e-01 : f32
    %88 = vector.broadcast %cst_29 : f32 to vector<1x128xf32>
    %89 = arith.mulf %88, %74 : vector<1x128xf32>
    %90 = arith.addf %72, %89 : vector<1x128xf32>
    %cst_30 = arith.constant 5.000000e-01 : f32
    %91 = vector.broadcast %cst_30 : f32 to vector<1x128xf32>
    %92 = arith.mulf %91, %77 : vector<1x128xf32>
    %93 = arith.subf %75, %92 : vector<1x128xf32>
    %cst_31 = arith.constant 5.000000e-01 : f32
    %94 = vector.broadcast %cst_31 : f32 to vector<1x128xf32>
    %95 = arith.mulf %94, %78 : vector<1x128xf32>
    %96 = arith.subf %76, %95 : vector<1x128xf32>
    %cst_32 = arith.constant 5.000000e-01 : f32
    %97 = vector.broadcast %cst_32 : f32 to vector<1x128xf32>
    %98 = arith.mulf %97, %77 : vector<1x128xf32>
    %99 = arith.addf %75, %98 : vector<1x128xf32>
    %cst_33 = arith.constant 5.000000e-01 : f32
    %100 = vector.broadcast %cst_33 : f32 to vector<1x128xf32>
    %101 = arith.mulf %100, %78 : vector<1x128xf32>
    %102 = arith.addf %76, %101 : vector<1x128xf32>
    %103 = arith.subf %87, %81 : vector<1x128xf32>
    %104 = arith.subf %90, %84 : vector<1x128xf32>
    %105 = arith.mulf %103, %104 : vector<1x128xf32>
    %106 = arith.subf %99, %93 : vector<1x128xf32>
    %107 = arith.subf %102, %96 : vector<1x128xf32>
    %108 = arith.mulf %106, %107 : vector<1x128xf32>
    %109 = arith.minimumf %87, %99 : vector<1x128xf32>
    %110 = arith.maximumf %81, %93 : vector<1x128xf32>
    %111 = arith.subf %109, %110 : vector<1x128xf32>
    %cst_34 = arith.constant 0.000000e+00 : f32
    %112 = vector.broadcast %cst_34 : f32 to vector<1x128xf32>
    %113 = arith.maximumf %111, %112 : vector<1x128xf32>
    %114 = arith.minimumf %90, %102 : vector<1x128xf32>
    %115 = arith.maximumf %84, %96 : vector<1x128xf32>
    %116 = arith.subf %114, %115 : vector<1x128xf32>
    %cst_35 = arith.constant 0.000000e+00 : f32
    %117 = vector.broadcast %cst_35 : f32 to vector<1x128xf32>
    %118 = arith.maximumf %116, %117 : vector<1x128xf32>
    %119 = arith.mulf %113, %118 : vector<1x128xf32>
    %120 = arith.addf %105, %108 : vector<1x128xf32>
    %121 = arith.subf %120, %119 : vector<1x128xf32>
    %cst_36 = arith.constant 9.99999996E-13 : f32
    %122 = vector.broadcast %cst_36 : f32 to vector<1x128xf32>
    %123 = arith.maximumf %121, %122 : vector<1x128xf32>
    %124 = arith.divf %119, %123 : vector<1x128xf32>
    %125 = arith.maximumf %87, %99 : vector<1x128xf32>
    %126 = arith.minimumf %81, %93 : vector<1x128xf32>
    %127 = arith.subf %125, %126 : vector<1x128xf32>
    %cst_37 = arith.constant 0.000000e+00 : f32
    %128 = vector.broadcast %cst_37 : f32 to vector<1x128xf32>
    %129 = arith.maximumf %127, %128 : vector<1x128xf32>
    %130 = arith.maximumf %90, %102 : vector<1x128xf32>
    %131 = arith.minimumf %84, %96 : vector<1x128xf32>
    %132 = arith.subf %130, %131 : vector<1x128xf32>
    %cst_38 = arith.constant 0.000000e+00 : f32
    %133 = vector.broadcast %cst_38 : f32 to vector<1x128xf32>
    %134 = arith.maximumf %132, %133 : vector<1x128xf32>
    %135 = arith.mulf %129, %134 : vector<1x128xf32>
    %136 = arith.subf %135, %121 : vector<1x128xf32>
    %cst_39 = arith.constant 9.99999996E-13 : f32
    %137 = vector.broadcast %cst_39 : f32 to vector<1x128xf32>
    %138 = arith.maximumf %135, %137 : vector<1x128xf32>
    %139 = arith.divf %136, %138 : vector<1x128xf32>
    %140 = arith.subf %124, %139 : vector<1x128xf32>
    %cst_40 = arith.constant 1.000000e+00 : f32
    %141 = vector.broadcast %cst_40 : f32 to vector<1x128xf32>
    %142 = arith.subf %141, %140 : vector<1x128xf32>
    %cst_41 = arith.constant 0.000000e+00 : f32
    %143 = vector.broadcast %cst_41 : f32 to vector<1x128xf32>
    %144 = arith.select %57, %142, %143 : vector<1x128xi1>, vector<1x128xf32>
    %145 = vector.shape_cast %144 : vector<1x128xf32> to vector<1x1x128xf32>
    %cst_42 = arith.constant dense<0.000000e+00> : vector<1xf32>
    %146 = vector.multi_reduction <add>, %145, %cst_42 [1, 2] : vector<1x1x128xf32> to vector<1xf32>
    %147 = vector.shape_cast %146 : vector<1xf32> to vector<1x1x1xf32>
    %148 = vector.extract %147[0, 0, 0] : f32 from vector<1x1x1xf32>
    %149 = arith.divf %148, %54 : f32
    %c0_43 = arith.constant 0 : index
    %150 = memref.load %arg6[%c0_43] : memref<4xf32, #tpu.memory_space<smem>>
    memref.store %37, %arg6[%c0_43] : memref<4xf32, #tpu.memory_space<smem>>
    %c1 = arith.constant 1 : index
    %151 = memref.load %arg6[%c1] : memref<4xf32, #tpu.memory_space<smem>>
    memref.store %51, %arg6[%c1] : memref<4xf32, #tpu.memory_space<smem>>
    %c2 = arith.constant 2 : index
    %152 = memref.load %arg6[%c2] : memref<4xf32, #tpu.memory_space<smem>>
    memref.store %70, %arg6[%c2] : memref<4xf32, #tpu.memory_space<smem>>
    %c3 = arith.constant 3 : index
    %153 = memref.load %arg6[%c3] : memref<4xf32, #tpu.memory_space<smem>>
    memref.store %149, %arg6[%c3] : memref<4xf32, #tpu.memory_space<smem>>
    return
  }
}

</mosaic_0001>

<llo_original>
// kernel: tpu_custom_call.1
$region0: #{tpu_custom_call.1}
  #allocation0 [shape = 'u32[]', space=smem, size = 0x4, offset = 0x4, fixed_abs, tag = 'smem constant byte address 0x4 - core index']
  #allocation1 [shape = 'u32[144,128]{1,0:T(1,128)}', space=vmem, size = 0x12000, scoped, tag = 'internal scratch']
  #allocation2 [shape = 's32[1]{0:T(128)S(6)}', space=smem, size = 0x200, scoped, tag = 'scoped memory for tpu_custom_call.1']
  %s0 = inlined_call_operand.<no memory space> [shape: s32[1], index: 0, kind: input, shape index: {}]
  %s1 = inlined_call_operand.vmem [shape: f32[2,16,5], index: 1, kind: input, shape index: {}]
  %s2 = inlined_call_operand.vmem [shape: s32[2,16], index: 2, kind: input, shape index: {}]
  %s3 = inlined_call_operand.vmem [shape: f32[2,1], index: 3, kind: input, shape index: {}]
  %s4 = inlined_call_operand.vmem [shape: f32[8,128], index: 4, kind: input, shape index: {}]
  %s5 = inlined_call_operand.vmem [shape: f32[8,128], index: 5, kind: input, shape index: {}]
  %s6 = inlined_call_operand.hbm [shape: f32[4], index: 6, kind: output, shape index: {}]
  %s7 = sld [smem:[#allocation0]]
  $region34: #{tpu_custom_call.1} parent=0
    _
  %s9 = ssub.s32 1, %s7
  %s10 = scalar_select 0, %s9, %s7
  %11 = sst [smem:[#allocation2]] %s0
  $region1: #{tpu_custom_call.1} parent=0
    #allocation3 [shape = 'u8[512]{0}', space=smem, size = 0x200, scoped, tag = 'output window, operand 0, single buffered']
    #allocation4 [shape = 's32[1]{0}', space=sflag, size = 0x4, scoped, tag = 'scoped memory for tpu_custom_call.1']
    %12 = vsyncpa [#allocation4], 0
    // Predicated region
    $region2: #{tpu_custom_call.1} parent=1 // pred_check
      _
    $region3: #{tpu_custom_call.1} parent=1 // pred_check_branch
      %14 = sbr.rel (0) target = $region5
    $region4: #{tpu_custom_call.1} parent=1 // pred_region
      _
    $region5: #{tpu_custom_call.1} parent=1 // pred_fallthru
      _
    // Predicated region
    $region6: #{tpu_custom_call.1} parent=1 // pred_check
      _
    $region7: #{tpu_custom_call.1} parent=1 // pred_check_branch
      %16 = sbr.rel (0) target = $region9
    $region8: #{tpu_custom_call.1} parent=1 // pred_region
      _
    $region9: #{tpu_custom_call.1} parent=1 // pred_fallthru
      _
    // Predicated region
    $region10: #{tpu_custom_call.1} parent=1 // pred_check
      _
    $region11: #{tpu_custom_call.1} parent=1 // pred_check_branch
      %18 = sbr.rel (0) target = $region13
    $region12: #{tpu_custom_call.1} parent=1 // pred_region
      _
    $region13: #{tpu_custom_call.1} parent=1 // pred_fallthru
      _
    // Predicated region
    $region14: #{tpu_custom_call.1} parent=1 // pred_check
      _
    $region15: #{tpu_custom_call.1} parent=1 // pred_check_branch
      %20 = sbr.rel (0) target = $region17
    $region16: #{tpu_custom_call.1} parent=1 // pred_region
      _
    $region17: #{tpu_custom_call.1} parent=1 // pred_fallthru
      _
    // Predicated region
    $region18: #{tpu_custom_call.1} parent=1 // pred_check
      _
    $region19: #{tpu_custom_call.1} parent=1 // pred_check_branch
      %22 = sbr.rel (0) target = $region21
    $region20: #{tpu_custom_call.1} parent=1 // pred_region
      _
    $region21: #{tpu_custom_call.1} parent=1 // pred_fallthru
      _
    // Predicated region
    $region22: #{tpu_custom_call.1} parent=1 // pred_check
      _
    $region23: #{tpu_custom_call.1} parent=1 // pred_check_branch
      %24 = sbr.rel (0) target = $region25
    $region24: #{tpu_custom_call.1} parent=1 // pred_region
      _
    $region25: #{tpu_custom_call.1} parent=1 // pred_fallthru
      _
    %v25 = vld [vmem:[%s1] sm:$0xff]
    %v26 = vld [vmem:[%s1 + $0x8] sm:$0xff]
    %v27 = vld [vmem:[%s1 + $0x10] sm:$0xff]
    %v28 = vld [vmem:[%s1 + $0x18] sm:$0xff]
    %v29 = vld [vmem:[%s2] sm:$0x3]
    %vm30 = vcmask 31744
    %v31 = vsel %vm30, %v25, -inf
    %32 = vmax.xlane.f32.xlu0 %v31
    %v33 = vpop.xlane.xlu0 %32
    %v34 = vsel %vm30, %v26, -inf
    %35 = vmax.xlane.f32.xlu0 %v34
    %v36 = vpop.xlane.xlu0 %35
    %v37 = vsel %vm30, %v27, -inf
    %38 = vmax.xlane.f32.xlu0 %v37
    %v39 = vpop.xlane.xlu0 %38
    %v40 = vsel %vm30, %v28, -inf
    %41 = vmax.xlane.f32.xlu0 %v40
    %v42 = vpop.xlane.xlu0 %41
    %v43 = vmax.f32 %v33, %v25
    %v44 = vmax.f32 %v36, %v26
    %v45 = vmax.f32 %v39, %v27
    %v46 = vmax.f32 %v42, %v28
    %48 = vset.pattern.permute.xlu0 4
    %49 = vperm.xlu0 %48, %v43
    %v50 = vpop.permute.xlu0 %49
    %53 = vset.pattern.permute.xlu0 4
    %54 = vperm.xlu0 %53, %v44
    %v55 = vpop.permute.xlu0 %54
    %58 = vset.pattern.permute.xlu0 4
    %59 = vperm.xlu0 %58, %v45
    %v60 = vpop.permute.xlu0 %59
    %63 = vset.pattern.permute.xlu0 4
    %64 = vperm.xlu0 %63, %v46
    %v65 = vpop.permute.xlu0 %64
    %v67 = vsub.f32 %v25, %v50
    %v68 = vsub.f32 %v26, %v55
    %v69 = vsub.f32 %v27, %v60
    %v70 = vsub.f32 %v28, %v65
    %v71 = vmul.f32 %v67, 1.442695
    %v72 = vpow.pop %v71
    %v73 = vmul.f32 %v68, 1.442695
    %v74 = vpow.pop %v73
    %v75 = vmul.f32 %v69, 1.442695
    %v76 = vpow.pop %v75
    %v77 = vmul.f32 %v70, 1.442695
    %v78 = vpow.pop %v77
    %vm79 = vcmask 39936
    %v80 = vsel %vm79, %v72, 0.0
    %81 = vadd.xlane.f32.xlu0 %v80
    %v82 = vpop.xlane.xlu0 %81
    %v83 = vsel %vm79, %v74, 0.0
    %84 = vadd.xlane.f32.xlu0 %v83
    %v85 = vpop.xlane.xlu0 %84
    %v86 = vsel %vm79, %v76, 0.0
    %87 = vadd.xlane.f32.xlu0 %v86
    %v88 = vpop.xlane.xlu0 %87
    %v89 = vsel %vm79, %v78, 0.0
    %90 = vadd.xlane.f32.xlu0 %v89
    %v91 = vpop.xlane.xlu0 %90
    %v92 = vlog2.pop %v82
    %v93 = vmul.f32 %v92, 0.6931472
    %v94 = vlog2.pop %v85
    %v95 = vmul.f32 %v94, 0.6931472
    %v96 = vlog2.pop %v88
    %v97 = vmul.f32 %v96, 0.6931472
    %v98 = vlog2.pop %v91
    %v99 = vmul.f32 %v98, 0.6931472
    %v100 = vadd.f32 %v93, %v43
    %v101 = vadd.f32 %v95, %v44
    %v102 = vadd.f32 %v97, %v45
    %v103 = vadd.f32 %v99, %v46
    %v104 = vlaneseq
    %v105 = vand.u32 %v104, 127
    %v106 = vlaneseq
    %v107 = vshrl.u32 %v106, 7
    %v108 = vsub.s32 0, %v107
    %v109 = vrot.slane %v29, %v108
    %111 = vbcast.lane.b32.xlu0 %v109, 256
    %v112 = vpop.permute.xlu0 %111
    %s114 = sor.u32 256, 8
    %115 = vbcast.lane.b32.xlu0 %v109, %s114
    %v116 = vpop.permute.xlu0 %115
    %v117 = vlaneseq
    %v118 = vshrl.u32 %v117, 7
    %v119 = vsub.s32 1, %v118
    %v120 = vrot.slane %v29, %v119
    %122 = vbcast.lane.b32.xlu0 %v120, 256
    %v123 = vpop.permute.xlu0 %122
    %s125 = sor.u32 256, 8
    %126 = vbcast.lane.b32.xlu0 %v120, %s125
    %v127 = vpop.permute.xlu0 %126
    %vm128 = vcmp.eq.s32.totalorder %v105, %v112
    %vm129 = vcmp.eq.s32.totalorder %v105, %v116
    %vm130 = vcmp.eq.s32.totalorder %v105, %v123
    %vm131 = vcmp.eq.s32.totalorder %v105, %v127
    %v132 = vsel %vm128, %v25, 0.0
    %v133 = vsel %vm129, %v26, 0.0
    %v134 = vsel %vm130, %v27, 0.0
    %v135 = vsel %vm131, %v28, 0.0
    %v136 = vsel %vm79, %v132, 0.0
    %137 = vadd.xlane.f32.xlu0 %v136
    %v138 = vpop.xlane.xlu0 %137
    %v139 = vsel %vm79, %v133, 0.0
    %140 = vadd.xlane.f32.xlu0 %v139
    %v141 = vpop.xlane.xlu0 %140
    %v142 = vsel %vm79, %v134, 0.0
    %143 = vadd.xlane.f32.xlu0 %v142
    %v144 = vpop.xlane.xlu0 %143
    %v145 = vsel %vm79, %v135, 0.0
    %146 = vadd.xlane.f32.xlu0 %v145
    %v147 = vpop.xlane.xlu0 %146
    %vm148 = vcmp.eq.s32.totalorder %v29, 4
    %v149 = vsel %vm148, 0.1, 1.0
    %v150 = vsub.f32 %v100, %v138
    %v151 = vsub.f32 %v101, %v141
    %v152 = vsub.f32 %v102, %v144
    %v153 = vsub.f32 %v103, %v147
    %158 = vset.pattern.permute.xlu0 4
    %159 = vperm.xlu0 %158, %v150
    %v160 = vpop.permute.xlu0 %159
    %161 = vset.pattern.permute.xlu0 4
    %162 = vperm.xlu0 %161, %v151
    %v163 = vpop.permute.xlu0 %162
    %164 = vset.pattern.permute.xlu0 4
    %165 = vperm.xlu0 %164, %v152
    %v166 = vpop.permute.xlu0 %165
    %167 = vset.pattern.permute.xlu0 4
    %168 = vperm.xlu0 %167, %v153
    %v169 = vpop.permute.xlu0 %168
    %v170 = vlaneseq
    %v171 = vshrl.u32 %v170, 7
    %v172 = vsub.s32 %v105, %v171
    %v173 = vrot.slane %v160, %v172
    %v174 = vadd.s32 %v105, 4294967288
    %v175 = vlaneseq
    %v176 = vshrl.u32 %v175, 7
    %v177 = vsub.s32 %v174, %v176
    %v178 = vrot.slane %v163, %v177
    %vm179 = vcmask 130112
    %v180 = vsel %vm179, %v178, %v173
    %v181 = vlaneseq
    %v182 = vshrl.u32 %v181, 7
    %v183 = vsub.s32 %v105, %v182
    %v184 = vrot.slane %v166, %v183
    %v185 = vlaneseq
    %v186 = vshrl.u32 %v185, 7
    %v187 = vsub.s32 %v174, %v186
    %v188 = vrot.slane %v169, %v187
    %v189 = vsel %vm179, %v188, %v184
    %vm190 = vcmask 1041409
    %v191 = vsel %vm190, %v189, %v180
    %v193 = vmul.f32 %v149, %v191
    %vm194 = vcmask 123904
    %v195 = vsel %vm194, %v193, 0.0
    %196 = vadd.xlane.f32.xlu0 %v195
    %v197 = vpop.xlane.xlu0 %196
    %v198 = vrot.slane %v197, 4
    %v199 = vadd.f32 %v197, %v198
    %v200 = vrot.slane %v199, 2
    %v201 = vadd.f32 %v199, %v200
    %v202 = vrot.slane %v201, 1
    %v203 = vadd.f32 %v201, %v202
    %s204 = vtos %v203
    %v205 = vsel %vm194, %v149, 0.0
    %206 = vadd.xlane.f32.xlu0 %v205
    %v207 = vpop.xlane.xlu0 %206
    %v208 = vrot.slane %v207, 4
    %v209 = vadd.f32 %v207, %v208
    %v210 = vrot.slane %v209, 2
    %v211 = vadd.f32 %v209, %v210
    %v212 = vrot.slane %v211, 1
    %v213 = vadd.f32 %v211, %v212
    %s214 = vtos %v213
    %v215 = vstv %s214
    %v216 = vrcp.pop %v215
    %s217 = vtos %v216
    %s218 = smul.f32 %s204, %s217
    %vm219 = vcmp.ge.f32.partialorder %v33, %v25
    %vm220 = vcmp.ge.f32.partialorder %v36, %v26
    %vm221 = vcmp.ge.f32.partialorder %v39, %v27
    %vm222 = vcmp.ge.f32.partialorder %v42, %v28
    %v223 = vsel %vm219, 1.0, 0.0
    %v224 = vsel %vm220, 1.0, 0.0
    %v225 = vsel %vm221, 1.0, 0.0
    %v226 = vsel %vm222, 1.0, 0.0
    %231 = vset.pattern.permute.xlu0 4
    %232 = vperm.xlu0 %231, %v223
    %v233 = vpop.permute.xlu0 %232
    %234 = vset.pattern.permute.xlu0 4
    %235 = vperm.xlu0 %234, %v224
    %v236 = vpop.permute.xlu0 %235
    %237 = vset.pattern.permute.xlu0 4
    %238 = vperm.xlu0 %237, %v225
    %v239 = vpop.permute.xlu0 %238
    %240 = vset.pattern.permute.xlu0 4
    %241 = vperm.xlu0 %240, %v226
    %v242 = vpop.permute.xlu0 %241
    %v243 = vlaneseq
    %v244 = vshrl.u32 %v243, 7
    %v245 = vsub.s32 %v105, %v244
    %v246 = vrot.slane %v233, %v245
    %v247 = vlaneseq
    %v248 = vshrl.u32 %v247, 7
    %v249 = vsub.s32 %v174, %v248
    %v250 = vrot.slane %v236, %v249
    %v251 = vsel %vm179, %v250, %v246
    %v252 = vlaneseq
    %v253 = vshrl.u32 %v252, 7
    %v254 = vsub.s32 %v105, %v253
    %v255 = vrot.slane %v239, %v254
    %v256 = vlaneseq
    %v257 = vshrl.u32 %v256, 7
    %v258 = vsub.s32 %v174, %v257
    %v259 = vrot.slane %v242, %v258
    %v260 = vsel %vm179, %v259, %v255
    %v261 = vsel %vm190, %v260, %v251
    %v263 = vsel %vm194, %v261, 0.0
    %264 = vadd.xlane.f32.xlu0 %v263
    %v265 = vpop.xlane.xlu0 %264
    %v266 = vld [vmem:[%s3] sm:$0x3]
    %v267 = vsub.f32 %v265, %v266
    %v268 = vand.u32 2147483647, %v267
    %vm269 = vcmask 1024
    %v270 = vsel %vm269, %v268, 0.0
    %271 = vadd.xlane.f32.xlu0 %v270
    %v272 = vpop.xlane.xlu0 %271
    %v273 = vrot.slane %v272, 4
    %v274 = vadd.f32 %v272, %v273
    %v275 = vrot.slane %v274, 2
    %v276 = vadd.f32 %v274, %v275
    %v277 = vrot.slane %v276, 1
    %v278 = vadd.f32 %v276, %v277
    %s279 = vtos %v278
    %v280 = vrcp.pop 2.0
    %s281 = vtos %v280
    %s282 = smul.f32 %s279, %s281
    %s283 = sld [smem:[#allocation2]]
    %s284 = scvt.s32.f32 %s283
    %s285 = smax.f32 %s284, 1.0
    %v286 = vstv %s283
    %vm287 = vcmp.lt.s32.totalorder %v105, %v286
    %v288 = vld [vmem:[%s4] sm:$0xff]
    %v289 = vld [vmem:[%s5] sm:$0xff]
    %v290 = vsub.f32 %v288, %v289
    %v291 = vand.u32 2147483647, %v290
    %v292 = vsel %vm287, 1, 0
    %vm293 = vcmp.eq.s32.totalorder %v292, 1
    %v294 = vsel %vm293, %v291, 0.0
    %295 = vadd.xlane.f32.xlu0 %v294
    %v296 = vpop.xlane.xlu0 %295
    %v297 = vrot.slane %v296, 4
    %v298 = vadd.f32 %v296, %v297
    %v299 = vrot.slane %v298, 2
    %v300 = vadd.f32 %v298, %v299
    %v301 = vrot.slane %v300, 1
    %v302 = vadd.f32 %v300, %v301
    %s303 = vtos %v302
    %v304 = vstv %s285
    %v305 = vrcp.pop %v304
    %s306 = vtos %v305
    %s307 = smul.f32 %s303, %s306
    %v308 = vmul.f32 %v288, 0.5
    %v310 = vrot.slane %v308, 2
    %v312 = vsub.f32 %v288, %v310
    %v313 = vadd.f32 %v288, %v310
    %v314 = vmul.f32 %v289, 0.5
    %v316 = vrot.slane %v314, 2
    %v318 = vsub.f32 %v289, %v316
    %v319 = vadd.f32 %v289, %v316
    %v320 = vsub.f32 %v313, %v312
    %v322 = vrot.slane %v320, 1
    %v324 = vmul.f32 %v320, %v322
    %v325 = vsub.f32 %v319, %v318
    %v327 = vrot.slane %v325, 1
    %v329 = vmul.f32 %v325, %v327
    %v330 = vmin.f32 %v313, %v319
    %v331 = vmax.f32 %v312, %v318
    %v332 = vsub.f32 %v330, %v331
    %v333 = vmax.f32 %v332, 0.0
    %v335 = vrot.slane %v333, 1
    %v337 = vmul.f32 %v333, %v335
    %v338 = vadd.f32 %v324, %v329
    %v339 = vsub.f32 %v338, %v337
    %v340 = vmax.f32 %v339, 1e-12
    %v341 = vrcp.pop %v340
    %v342 = vmul.f32 %v337, %v341
    %v343 = vmax.f32 %v313, %v319
    %v344 = vmin.f32 %v312, %v318
    %v345 = vsub.f32 %v343, %v344
    %v346 = vmax.f32 %v345, 0.0
    %v348 = vrot.slane %v346, 1
    %v350 = vmul.f32 %v346, %v348
    %v351 = vsub.f32 %v350, %v339
    %v352 = vmax.f32 %v350, 1e-12
    %v353 = vrcp.pop %v352
    %v354 = vmul.f32 %v351, %v353
    %v355 = vsub.f32 %v342, %v354
    %v356 = vsub.f32 1.0, %v355
    %v357 = vsel %vm287, %v356, 0.0
    %vm358 = vcmask 1040384
    %v359 = vsel %vm358, %v357, 0.0
    %360 = vadd.xlane.f32.xlu0 %v359
    %v361 = vpop.xlane.xlu0 %360
    %v362 = vrot.slane %v361, 4
    %v363 = vadd.f32 %v361, %v362
    %v364 = vrot.slane %v363, 2
    %v365 = vadd.f32 %v363, %v364
    %v366 = vrot.slane %v365, 1
    %v367 = vadd.f32 %v365, %v366
    %s368 = vtos %v367
    %v369 = vstv %s285
    %v370 = vrcp.pop %v369
    %s371 = vtos %v370
    %s372 = smul.f32 %s368, %s371
    %s373 = scalar_lea.smem [#allocation3], 0
    %374 = sst [smem:[%s373]] %s218
    %s375 = scalar_lea.smem [#allocation3], 1
    %376 = sst [smem:[%s375]] %s282
    %s377 = scalar_lea.smem [#allocation3], 2
    %378 = sst [smem:[%s377]] %s307
    %s379 = scalar_lea.smem [#allocation3], 3
    %380 = sst [smem:[%s379]] %s372
    // Predicated region
    $region26: #{tpu_custom_call.1} parent=1 // pred_check
      _
    $region27: #{tpu_custom_call.1} parent=1 // pred_check_branch
      %382 = sbr.rel (0) target = $region29
    $region28: #{tpu_custom_call.1} parent=1 // pred_region
      %s384 = ssub.s32 16, 16
      %385 = vsyncadd [#allocation4], %s384
      %388 = dma.smem_to_hbm [#allocation3], 16, %s6, [#allocation4]
    $region29: #{tpu_custom_call.1} parent=1 // pred_fallthru
      _
    // Predicated region
    $region30: #{tpu_custom_call.1} parent=1 // pred_check
      _
    $region31: #{tpu_custom_call.1} parent=1 // pred_check_branch
      %390 = sbr.rel (0) target = $region33
    $region32: #{tpu_custom_call.1} parent=1 // pred_region
      %391 = dma.done [#allocation4], 16
    $region33: #{tpu_custom_call.1} parent=1 // pred_fallthru
      _
    %392 = sfence
    %393 = vsyncpa [#allocation4], 1

</llo_original>
